<compile_context>
chip_gen: v6e
topology: v6e:2x2x1
jax: 0.10.0
libtpu: 0.0.40
codegen_flags: <defaults>
</compile_context>

<pallas_src>
import functools

import jax
import jax.numpy as jnp
from jax.experimental import pallas as pl
from jax.experimental.pallas import tpu as pltpu


# ------------------------------ small helpers ---------------------------------
def _round_up(x: int, m: int) -> int:
    return ((x + m - 1) // m) * m


def _pad2d(a, rows: int, cols: int):
    r, c = a.shape
    return jnp.pad(a, ((0, rows - r), (0, cols - c)))


def _choose_tm(batch: int) -> int:
    """Pick the batch tile.

    Small batches: one sublane-aligned tile.  Large batches: at least 2 grid steps
    (so the 'parallel' axis shards across both TensorCores on v7x), tiles of at most
    512 rows, minimizing tail padding."""
    if batch < 256:
        return _round_up(batch, 8)
    min_steps = max(2, -(-batch // 512))
    best_key, best_tm = None, None
    for steps in range(min_steps, min_steps + 8):
        tm = _round_up(-(-batch // steps), 8)
        pad = tm * steps - batch
        key = (pad, -tm)
        if best_key is None or key < best_key:
            best_key, best_tm = key, tm
    return best_tm


# ----------------------------- Pallas kernel ----------------------------------
def _pcl_kernel(
    x_ref,        # (TM, Ni)          f32  nonconvex inputs (unpadded lanes)
    latcx_ref,    # (TM, LC_p)        f32  [latent | convex_inputs | 0]
    wnc_t_ref,    # (Ni, No_p)        bf16 nonconvex_weights^T
    bnc_ref,      # (1, No_p)         f32  nonconvex_bias
    wcat_t_ref,   # (No_p, LC_p+Co_p) bf16 [W_ncl^T | W_ncc^T | 0 | W_latu^T]
    bcat_ref,     # (1, LC_p+Co_p)    f32  [b_ci    | b_skip  | 0 | b_co   ]
    wz_ref,       # (LC_p, Co_p)      bf16 [exp(log_W)^T ; W_cv^T ; 0]
    out_ref,      # (TM, No_p+Co_p)   f32  [u | z]
    *,
    ci: int,
    lc_p: int,
    no_p: int,
):
    # u = relu(x @ W_nc^T + b_nc)   -- MXU, bf16 operands, f32 accumulation
    u = jnp.maximum(
        jnp.dot(x_ref[...].astype(jnp.bfloat16), wnc_t_ref[...],
                preferred_element_type=jnp.float32) + bnc_ref[...],
        0.0,
    )
    out_ref[:, :no_p] = u.astype(out_ref.dtype)

    # One fused matmul from u: lanes [0, lc_p) feed the packed (lat|cx) elementwise
    # paths; lanes [lc_p, ...) are the direct W_latu @ u + b_co term.
    h = jnp.dot(u.astype(jnp.bfloat16), wcat_t_ref[...],
                preferred_element_type=jnp.float32) + bcat_ref[...]
    h_lc = h[:, :lc_p]
    term3 = h[:, lc_p:]

    # ReLU only on the first `ci` lanes (latent head): lane mask, pure VPU.
    lane = jax.lax.broadcasted_iota(jnp.int32, h_lc.shape, 1)
    h_lc = jnp.where(lane < ci, jnp.maximum(h_lc, 0.0), h_lc)

    inner_gate = h_lc * latcx_ref[...]        # [lat*relu(.) | cx*(.) | 0]

    # Single stacked matmul replaces (inner @ expW^T + gate @ Wcv^T).
    z = jnp.dot(inner_gate.astype(jnp.bfloat16), wz_ref[...],
                preferred_element_type=jnp.float32) + term3
    out_ref[:, no_p:] = z.astype(out_ref.dtype)


# ------------------------------- Layer factory ---------------------------------
def make_partially_convex_layer(params):
    """One-time weight preparation + a jittable forward fn.

    Returns (prepared, forward).  `prepared` is a pytree of pre-transposed,
    pre-exponentiated, packed, zero-padded (bf16) weights computed once outside the
    hot path.  `forward(prepared, x, latent, cx)` runs the Pallas kernel and accepts
    1-D vectors (exactly the PyTorch forward) or 2-D (B, dim) batches.
    """
    No, Ni = params["nonconvex_weights"].shape
    Co, Ci = params["log_weights"].shape
    S = params["convex_weights"].shape[1]

    No_p = _round_up(No, 128)
    Co_p = _round_up(Co, 128)
    LC_p = _round_up(Ci + S, 128)        # packed (latent | convex_inputs) lanes
    CAT_p = LC_p + Co_p

    f32 = lambda a: jnp.asarray(a, jnp.float32)
    bf16 = lambda a: a.astype(jnp.bfloat16)
    row = lambda v: f32(v).reshape(1, -1)

    # ---- one-time preparation: transpose, exp, pack, pad, bf16 ----
    wnc_t = bf16(_pad2d(f32(params["nonconvex_weights"]).T, Ni, No_p))      # (Ni, No_p)
    bnc = _pad2d(row(params["nonconvex_bias"]), 1, No_p)                    # (1, No_p) f32

    w_lc = jnp.concatenate(
        [f32(params["nonconvex_to_latent_weights"]).T,    # (No, Ci)
         f32(params["nonconvex_to_convex_weights"]).T],   # (No, S)
        axis=1,
    )
    w_lc = _pad2d(w_lc, No_p, LC_p)
    w_lat = _pad2d(f32(params["nonconvex_latent_weights"]).T, No_p, Co_p)
    wcat_t = bf16(jnp.concatenate([w_lc, w_lat], axis=1))                   # (No_p, CAT_p)

    b_lc = jnp.concatenate([f32(params["convex_inner_bias"]),
                            f32(params["skip_bias"]),
                            jnp.zeros((LC_p - Ci - S,), jnp.float32)])
    b_co = jnp.concatenate([f32(params["convex_outer_bias"]),
                            jnp.zeros((Co_p - Co,), jnp.float32)])
    bcat = jnp.concatenate([b_lc, b_co]).reshape(1, -1)                     # (1, CAT_p) f32

    # exponentiate BEFORE padding so padded rows/cols are zeros (inert).
    wz = jnp.concatenate([jnp.exp(f32(params["log_weights"])).T,  # (Ci, Co)
                          f32(params["convex_weights"]).T],       # (S, Co)
                         axis=0)
    wz = bf16(_pad2d(wz, LC_p, Co_p))                                       # (LC_p, Co_p)

    prepared = dict(wnc_t=wnc_t, bnc=bnc, wcat_t=wcat_t, bcat=bcat, wz=wz)

    kernel = functools.partial(_pcl_kernel, ci=Ci, lc_p=LC_p, no_p=No_p)

    def forward(prepared, nonconvex_inputs, latent, convex_inputs):
        single = nonconvex_inputs.ndim == 1
        x = jnp.atleast_2d(nonconvex_inputs).astype(jnp.float32)
        lat = jnp.atleast_2d(latent).astype(jnp.float32)
        cx = jnp.atleast_2d(convex_inputs).astype(jnp.float32)

        B = x.shape[0]
        TM = _choose_tm(B)
        Bp = _round_up(B, TM)
        grid = (Bp // TM,)

        # x keeps its true lane width (block last dim == full array dim -> no pad copy).
        xp = x if Bp == B else jnp.pad(x, ((0, Bp - B), (0, 0)))
        # lat|cx packed into one lane-dense block (single pad/copy replaces two streams).
        latcx = jnp.concatenate([lat, cx], axis=1)
        latcxp = _pad2d(latcx, Bp, LC_p)

        flops = 2 * Bp * (Ni * No_p + No_p * CAT_p + LC_p * Co_p)
        bytes_w = 2 * (Ni * No_p + No_p * CAT_p + LC_p * Co_p) + 4 * (No_p + CAT_p)
        bytes_act = 4 * Bp * (Ni + LC_p + No_p + Co_p)
        cost = pl.CostEstimate(flops=flops, transcendentals=0,
                               bytes_accessed=bytes_w + bytes_act)

        grid_spec = pltpu.PrefetchScalarGridSpec(
            num_scalar_prefetch=0,
            grid=grid,
            in_specs=[
                pl.BlockSpec((TM, Ni), lambda i: (i, 0)),
                pl.BlockSpec((TM, LC_p), lambda i: (i, 0)),
                # grid-invariant weights / biases
                pl.BlockSpec((Ni, No_p), lambda i: (0, 0)),
                pl.BlockSpec((1, No_p), lambda i: (0, 0)),
                pl.BlockSpec((No_p, CAT_p), lambda i: (0, 0)),
                pl.BlockSpec((1, CAT_p), lambda i: (0, 0)),
                pl.BlockSpec((LC_p, Co_p), lambda i: (0, 0)),
            ],
            out_specs=pl.BlockSpec((TM, No_p + Co_p), lambda i: (i, 0)),
        )

        out = pl.pallas_call(
            kernel,
            out_shape=jax.ShapeDtypeStruct((Bp, No_p + Co_p), jnp.float32),
            grid_spec=grid_spec,
            compiler_params=pltpu.CompilerParams(
                dimension_semantics=("parallel",)
            ),
            cost_estimate=cost,
        )(xp, latcxp,
          prepared["wnc_t"], prepared["bnc"],
          prepared["wcat_t"], prepared["bcat"],
          prepared["wz"])

        u = out[:B, :No]
        z = out[:B, No_p:No_p + Co]
        if single:
            return u[0], z[0]
        return u, z

    return prepared, forward


# ------------------------ Deterministic parameter init -------------------------
def _xavier_uniform(key, shape):
    fan_out, fan_in = shape
    limit = (6.0 / (fan_in + fan_out)) ** 0.5
    return jax.random.uniform(key, shape, jnp.float32, -limit, limit)


def init_params(key, convex_dims, nonconvex_dims, skip_dim):
    Co, Ci = convex_dims
    No, Ni = nonconvex_dims
    keys = jax.random.split(key, 6)
    return {
        "nonconvex_weights": _xavier_uniform(keys[0], (No, Ni)),
        "nonconvex_bias": jnp.zeros((No,), jnp.float32),
        "log_weights": _xavier_uniform(keys[1], (Co, Ci)),
        "nonconvex_to_latent_weights": _xavier_uniform(keys[2], (Ci, No)),
        "convex_inner_bias": jnp.zeros((Ci,), jnp.float32),
        "convex_weights": _xavier_uniform(keys[3], (Co, skip_dim)),
        "nonconvex_to_convex_weights": _xavier_uniform(keys[4], (skip_dim, No)),
        "skip_bias": jnp.zeros((skip_dim,), jnp.float32),
        "nonconvex_latent_weights": _xavier_uniform(keys[5], (Co, No)),
        "convex_outer_bias": jnp.zeros((Co,), jnp.float32),
    }


# ------------------------------ Pure-JAX reference -----------------------------
def reference_forward(p, x, latent, cx):
    u = jax.nn.relu(p["nonconvex_weights"] @ x + p["nonconvex_bias"])
    z = (
        jnp.exp(p["log_weights"])
        @ (latent * jax.nn.relu(p["nonconvex_to_latent_weights"] @ u + p["convex_inner_bias"]))
        + p["convex_weights"] @ (cx * (p["nonconvex_to_convex_weights"] @ u + p["skip_bias"]))
        + p["nonconvex_latent_weights"] @ u
        + p["convex_outer_bias"]
    )
    return u, z


def _rel_err(a, b):
    a = jnp.asarray(a, jnp.float32)
    b = jnp.asarray(b, jnp.float32)
    return float(jnp.linalg.norm(a - b) / (jnp.linalg.norm(b) + 1e-12))


# ----------------------------------- Main ---------------------------------------
if __name__ == "__main__":
    # Dims consistent with the module's constructor:
    #   convex_dimensions=(Co, Ci), nonconvex_dimensions=(No, Ni), skip_dim=S.
    Ni, No = 32, 64   # nonconvex_dimensions = (64, 32)
    Ci, Co = 48, 40   # convex_dimensions = (40, 48)
    S = 24            # convex_skip_dimension
    B = 8             # small batch

    key = jax.random.PRNGKey(0)
    kp, kx, kl, kc = jax.random.split(key, 4)
    params = init_params(kp, (Co, Ci), (No, Ni), S)

    prepared, forward = make_partially_convex_layer(params)  # one-time weight prep
    fwd_jit = jax.jit(forward)

    ref_batched = jax.vmap(lambda x, l, c: reference_forward(params, x, l, c))

    # --- small batched call ---
    x_b = jax.random.normal(kx, (B, Ni), jnp.float32)
    lat_b = jax.random.normal(kl, (B, Ci), jnp.float32)
    cx_b = jax.random.normal(kc, (B, S), jnp.float32)

    u_b, z_b = fwd_jit(prepared, x_b, lat_b, cx_b)
    jax.block_until_ready((u_b, z_b))
    u_ref_b, z_ref_b = ref_batched(x_b, lat_b, cx_b)
    assert u_b.shape == (B, No) and z_b.shape == (B, Co)
    assert _rel_err(u_b, u_ref_b) < 2e-2, _rel_err(u_b, u_ref_b)
    assert _rel_err(z_b, z_ref_b) < 3e-2, _rel_err(z_b, z_ref_b)

    # --- single-vector call (exactly the PyTorch module's forward signature) ---
    u1, z1 = fwd_jit(prepared, x_b[0], lat_b[0], cx_b[0])
    jax.block_until_ready((u1, z1))
    u1_ref, z1_ref = reference_forward(params, x_b[0], lat_b[0], cx_b[0])
    assert u1.shape == (No,) and z1.shape == (Co,)
    assert _rel_err(u1, u1_ref) < 2e-2, _rel_err(u1, u1_ref)
    assert _rel_err(z1, z1_ref) < 3e-2, _rel_err(z1, z1_ref)

    # --- larger batch: exercises the multi-step grid / tail-padding TM selection ---
    B2 = 264
    kx2, kl2, kc2 = jax.random.split(jax.random.PRNGKey(1), 3)
    x2 = jax.random.normal(kx2, (B2, Ni), jnp.float32)
    lat2 = jax.random.normal(kl2, (B2, Ci), jnp.float32)
    cx2 = jax.random.normal(kc2, (B2, S), jnp.float32)
    u2, z2 = fwd_jit(prepared, x2, lat2, cx2)
    jax.block_until_ready((u2, z2))
    u2_ref, z2_ref = ref_batched(x2, lat2, cx2)
    assert u2.shape == (B2, No) and z2.shape == (B2, Co)
    assert _rel_err(u2, u2_ref) < 2e-2, _rel_err(u2, u2_ref)
    assert _rel_err(z2, z2_ref) < 3e-2, _rel_err(z2, z2_ref)

    print("KERNEL_OK")
</pallas_src>

<mosaic_0001>
module attributes {stable_mosaic.version = 11 : i64} {
  func.func @_pcl_kernel(%arg0: i32, %arg1: memref<8x32xf32, #tpu.memory_space<vmem>>, %arg2: memref<8x128xf32, #tpu.memory_space<vmem>>, %arg3: memref<32x128xbf16, #tpu.memory_space<vmem>>, %arg4: memref<1x128xf32, #tpu.memory_space<vmem>>, %arg5: memref<128x256xbf16, #tpu.memory_space<vmem>>, %arg6: memref<1x256xf32, #tpu.memory_space<vmem>>, %arg7: memref<128x128xbf16, #tpu.memory_space<vmem>>, %arg8: memref<8x256xf32, #tpu.memory_space<vmem>>) attributes {dimension_semantics = [#tpu.dimension_semantics<parallel>], iteration_bounds = array<i64: 1>, scalar_prefetch = 0 : i64, scratch_operands = 0 : i64, tpu.core_type = #tpu.core_type<tc>, window_params = [{transform_indices = @transform_0, window_bounds = array<i64: 8, 32>}, {transform_indices = @transform_1, window_bounds = array<i64: 8, 128>}, {pipeline_mode = #tpu.pipeline_mode<synchronous>, transform_indices = @transform_2, window_bounds = array<i64: 32, 128>}, {pipeline_mode = #tpu.pipeline_mode<synchronous>, transform_indices = @transform_3, window_bounds = array<i64: 1, 128>}, {pipeline_mode = #tpu.pipeline_mode<synchronous>, transform_indices = @transform_4, window_bounds = array<i64: 128, 256>}, {pipeline_mode = #tpu.pipeline_mode<synchronous>, transform_indices = @transform_5, window_bounds = array<i64: 1, 256>}, {pipeline_mode = #tpu.pipeline_mode<synchronous>, transform_indices = @transform_6, window_bounds = array<i64: 128, 128>}, {transform_indices = @transform_7, window_bounds = array<i64: 8, 256>}]} {
    %c0 = arith.constant 0 : index
    %c0_0 = arith.constant 0 : index
    %0 = vector.load %arg1[%c0, %c0_0] : memref<8x32xf32, #tpu.memory_space<vmem>>, vector<8x32xf32>
    %1 = arith.truncf %0 : vector<8x32xf32> to vector<8x32xbf16>
    %c0_1 = arith.constant 0 : index
    %c0_2 = arith.constant 0 : index
    %2 = vector.load %arg3[%c0_1, %c0_2] : memref<32x128xbf16, #tpu.memory_space<vmem>>, vector<32x128xbf16>
    %cst = arith.constant dense<0.000000e+00> : vector<8x128xf32>
    %3 = tpu.matmul %1, %2, %cst {dimension_numbers = #tpu.dot_dimension_numbers<[1], [0], [0], [1], [0, 0, 1, 1], [], []>} : vector<8x32xbf16>, vector<32x128xbf16>, vector<8x128xf32> -> vector<8x128xf32>
    %c0_3 = arith.constant 0 : index
    %c0_4 = arith.constant 0 : index
    %4 = vector.load %arg4[%c0_3, %c0_4] : memref<1x128xf32, #tpu.memory_space<vmem>>, vector<1x128xf32>
    %5 = vector.broadcast %4 : vector<1x128xf32> to vector<8x128xf32>
    %6 = arith.addf %3, %5 : vector<8x128xf32>
    %cst_5 = arith.constant 0.000000e+00 : f32
    %7 = vector.broadcast %cst_5 : f32 to vector<8x128xf32>
    %8 = arith.maximumf %6, %7 : vector<8x128xf32>
    %c0_6 = arith.constant 0 : index
    %c0_7 = arith.constant 0 : index
    %9 = vector.load %arg8[%c0_6, %c0_7] : memref<8x256xf32, #tpu.memory_space<vmem>>, vector<8x128xf32>
    tpu.vector_store %arg8[%c0_6, %c0_7], %8 {strides = array<i32>} : memref<8x256xf32, #tpu.memory_space<vmem>>, vector<8x128xf32>,
    %10 = arith.truncf %8 : vector<8x128xf32> to vector<8x128xbf16>
    %c0_8 = arith.constant 0 : index
    %c0_9 = arith.constant 0 : index
    %11 = vector.load %arg5[%c0_8, %c0_9] : memref<128x256xbf16, #tpu.memory_space<vmem>>, vector<128x256xbf16>
    %cst_10 = arith.constant dense<0.000000e+00> : vector<8x256xf32>
    %12 = tpu.matmul %10, %11, %cst_10 {dimension_numbers = #tpu.dot_dimension_numbers<[1], [0], [0], [1], [0, 0, 1, 1], [], []>} : vector<8x128xbf16>, vector<128x256xbf16>, vector<8x256xf32> -> vector<8x256xf32>
    %c0_11 = arith.constant 0 : index
    %c0_12 = arith.constant 0 : index
    %13 = vector.load %arg6[%c0_11, %c0_12] : memref<1x256xf32, #tpu.memory_space<vmem>>, vector<1x256xf32>
    %14 = vector.broadcast %13 : vector<1x256xf32> to vector<8x256xf32>
    %15 = arith.addf %12, %14 : vector<8x256xf32>
    %16 = vector.extract_strided_slice %15 {offsets = [0, 0], sizes = [8, 128], strides = [1, 1]} : vector<8x256xf32> to vector<8x128xf32>
    %17 = vector.extract_strided_slice %15 {offsets = [0, 128], sizes = [8, 128], strides = [1, 1]} : vector<8x256xf32> to vector<8x128xf32>
    %18 = tpu.iota {dimensions = array<i32: 1>} : vector<8x128xi32>
    %c48_i32 = arith.constant 48 : i32
    %19 = vector.broadcast %c48_i32 : i32 to vector<8x128xi32>
    %20 = arith.cmpi slt, %18, %19 : vector<8x128xi32>
    %cst_13 = arith.constant 0.000000e+00 : f32
    %21 = vector.broadcast %cst_13 : f32 to vector<8x128xf32>
    %22 = arith.maximumf %16, %21 : vector<8x128xf32>
    %23 = arith.select %20, %22, %16 : vector<8x128xi1>, vector<8x128xf32>
    %c0_14 = arith.constant 0 : index
    %c0_15 = arith.constant 0 : index
    %24 = vector.load %arg2[%c0_14, %c0_15] : memref<8x128xf32, #tpu.memory_space<vmem>>, vector<8x128xf32>
    %25 = arith.mulf %23, %24 : vector<8x128xf32>
    %26 = arith.truncf %25 : vector<8x128xf32> to vector<8x128xbf16>
    %c0_16 = arith.constant 0 : index
    %c0_17 = arith.constant 0 : index
    %27 = vector.load %arg7[%c0_16, %c0_17] : memref<128x128xbf16, #tpu.memory_space<vmem>>, vector<128x128xbf16>
    %cst_18 = arith.constant dense<0.000000e+00> : vector<8x128xf32>
    %28 = tpu.matmul %26, %27, %cst_18 {dimension_numbers = #tpu.dot_dimension_numbers<[1], [0], [0], [1], [0, 0, 1, 1], [], []>} : vector<8x128xbf16>, vector<128x128xbf16>, vector<8x128xf32> -> vector<8x128xf32>
    %29 = arith.addf %28, %17 : vector<8x128xf32>
    %c0_19 = arith.constant 0 : index
    %c128 = arith.constant 128 : index
    %30 = vector.load %arg8[%c0_19, %c128] : memref<8x256xf32, #tpu.memory_space<vmem>>, vector<8x128xf32>
    tpu.vector_store %arg8[%c0_19, %c128], %29 {strides = array<i32>} : memref<8x256xf32, #tpu.memory_space<vmem>>, vector<8x128xf32>,
    return
  }
  func.func @transform_0(%arg0: i32) -> (i32, i32) {
    %c0_i32 = arith.constant 0 : i32
    %c0_i32_0 = arith.constant 0 : i32
    return %arg0, %c0_i32 : i32, i32
  }
  func.func @transform_1(%arg0: i32) -> (i32, i32) {
    %c0_i32 = arith.constant 0 : i32
    %c0_i32_0 = arith.constant 0 : i32
    return %arg0, %c0_i32 : i32, i32
  }
  func.func @transform_2(%arg0: i32) -> (i32, i32) {
    %c0_i32 = arith.constant 0 : i32
    %c0_i32_0 = arith.constant 0 : i32
    %c0_i32_1 = arith.constant 0 : i32
    return %c0_i32, %c0_i32_0 : i32, i32
  }
  func.func @transform_3(%arg0: i32) -> (i32, i32) {
    %c0_i32 = arith.constant 0 : i32
    %c0_i32_0 = arith.constant 0 : i32
    %c0_i32_1 = arith.constant 0 : i32
    return %c0_i32, %c0_i32_0 : i32, i32
  }
  func.func @transform_4(%arg0: i32) -> (i32, i32) {
    %c0_i32 = arith.constant 0 : i32
    %c0_i32_0 = arith.constant 0 : i32
    %c0_i32_1 = arith.constant 0 : i32
    return %c0_i32, %c0_i32_0 : i32, i32
  }
  func.func @transform_5(%arg0: i32) -> (i32, i32) {
    %c0_i32 = arith.constant 0 : i32
    %c0_i32_0 = arith.constant 0 : i32
    %c0_i32_1 = arith.constant 0 : i32
    return %c0_i32, %c0_i32_0 : i32, i32
  }
  func.func @transform_6(%arg0: i32) -> (i32, i32) {
    %c0_i32 = arith.constant 0 : i32
    %c0_i32_0 = arith.constant 0 : i32
    %c0_i32_1 = arith.constant 0 : i32
    return %c0_i32, %c0_i32_0 : i32, i32
  }
  func.func @transform_7(%arg0: i32) -> (i32, i32) {
    %c0_i32 = arith.constant 0 : i32
    %c0_i32_0 = arith.constant 0 : i32
    return %arg0, %c0_i32 : i32, i32
  }
}

</mosaic_0001>

<llo_original>
// kernel: forward.1
$region0: #{forward.1}
  #allocation0 [shape = 'u32[]', space=smem, size = 0x4, offset = 0x4, fixed_abs, tag = 'smem constant byte address 0x4 - core index']
  #allocation1 [shape = 'u32[144,128]{1,0:T(1,128)}', space=vmem, size = 0x12000, scoped, tag = 'internal scratch']
  %s0 = inlined_call_operand.vmem [shape: f32[8,32], index: 0, kind: input, shape index: {}]
  %s1 = inlined_call_operand.vmem [shape: f32[8,128], index: 1, kind: input, shape index: {}]
  %s2 = inlined_call_operand.vmem [shape: bf16[32,128], index: 2, kind: input, shape index: {}]
  %s3 = inlined_call_operand.vmem [shape: f32[1,128], index: 3, kind: input, shape index: {}]
  %s4 = inlined_call_operand.hbm [shape: bf16[128,256], index: 4, kind: input, shape index: {}]
  %s5 = inlined_call_operand.vmem [shape: f32[1,256], index: 5, kind: input, shape index: {}]
  %s6 = inlined_call_operand.hbm [shape: bf16[128,128], index: 6, kind: input, shape index: {}]
  %s7 = inlined_call_operand.vmem [shape: f32[8,256], index: 7, kind: output, shape index: {}]
  %s8 = sld [smem:[#allocation0]]
  $region46: #{forward.1} parent=0
    _
  %s10 = ssub.s32 1, %s8
  %s11 = scalar_select 0, %s10, %s8
  $region1: #{forward.1} parent=0
    #allocation2 [shape = 'u8[65536]{0}', space=vmem, size = 0x10000, scoped, tag = 'input window, operand 4, single buffered']
    #allocation3 [shape = 's32[1]{0}', space=sflag, size = 0x4, scoped, tag = 'scoped memory for forward.1']
    #allocation4 [shape = 'u8[32768]{0}', space=vmem, size = 0x8000, scoped, tag = 'input window, operand 6, single buffered']
    #allocation5 [shape = 's32[1]{0}', space=sflag, size = 0x4, scoped, tag = 'scoped memory for forward.1']
    %12 = vsyncpa [#allocation3], 0
    %13 = vsyncpa [#allocation5], 0
    // Predicated region
    $region2: #{forward.1} parent=1 // pred_check
      _
    $region3: #{forward.1} parent=1 // pred_check_branch
      %15 = sbr.rel (0) target = $region5
    $region4: #{forward.1} parent=1 // pred_region
      _
    $region5: #{forward.1} parent=1 // pred_fallthru
      _
    // Predicated region
    $region6: #{forward.1} parent=1 // pred_check
      _
    $region7: #{forward.1} parent=1 // pred_check_branch
      %17 = sbr.rel (0) target = $region9
    $region8: #{forward.1} parent=1 // pred_region
      _
    $region9: #{forward.1} parent=1 // pred_fallthru
      _
    // Predicated region
    $region10: #{forward.1} parent=1 // pred_check
      _
    $region11: #{forward.1} parent=1 // pred_check_branch
      %19 = sbr.rel (0) target = $region13
    $region12: #{forward.1} parent=1 // pred_region
      _
    $region13: #{forward.1} parent=1 // pred_fallthru
      _
    // Predicated region
    $region14: #{forward.1} parent=1 // pred_check
      _
    $region15: #{forward.1} parent=1 // pred_check_branch
      %21 = sbr.rel (0) target = $region17
    $region16: #{forward.1} parent=1 // pred_region
      _
    $region17: #{forward.1} parent=1 // pred_fallthru
      _
    // Predicated region
    $region18: #{forward.1} parent=1 // pred_check
      _
    $region19: #{forward.1} parent=1 // pred_check_branch
      %23 = sbr.rel (0) target = $region21
    $region20: #{forward.1} parent=1 // pred_region
      %s25 = ssub.s32 2048, 2048
      %26 = vsyncadd [#allocation3], %s25
      %s27 = sshll.u32 [#allocation2], 4
      %s28 = int_to_ptr.vmem [resolvable:$true] %s27
      %33 = dma.hbm_to_vmem [thread:$0]  %s4, 2048, %s28, [#allocation3], 128, 128, 8
    $region21: #{forward.1} parent=1 // pred_fallthru
      _
    // Predicated region
    $region22: #{forward.1} parent=1 // pred_check
      _
    $region23: #{forward.1} parent=1 // pred_check_branch
      %35 = sbr.rel (0) target = $region25
    $region24: #{forward.1} parent=1 // pred_region
      _
    $region25: #{forward.1} parent=1 // pred_fallthru
      _
    // Predicated region
    $region26: #{forward.1} parent=1 // pred_check
      _
    $region27: #{forward.1} parent=1 // pred_check_branch
      %37 = sbr.rel (0) target = $region29
    $region28: #{forward.1} parent=1 // pred_region
      %s39 = ssub.s32 1024, 1024
      %40 = vsyncadd [#allocation5], %s39
      %s41 = sshll.u32 [#allocation4], 4
      %s42 = int_to_ptr.vmem [resolvable:$true] %s41
      %47 = dma.hbm_to_vmem [thread:$0]  %s6, 1024, %s42, [#allocation5], 64, 64, 4
    $region29: #{forward.1} parent=1 // pred_fallthru
      _
    // Predicated region
    $region30: #{forward.1} parent=1 // pred_check
      _
    $region31: #{forward.1} parent=1 // pred_check_branch
      %49 = sbr.rel (0) target = $region33
    $region32: #{forward.1} parent=1 // pred_region
      %50 = dma.done [#allocation3], 2048
    $region33: #{forward.1} parent=1 // pred_fallthru
      _
    // Predicated region
    $region34: #{forward.1} parent=1 // pred_check
      _
    $region35: #{forward.1} parent=1 // pred_check_branch
      %52 = sbr.rel (0) target = $region37
    $region36: #{forward.1} parent=1 // pred_region
      %53 = dma.done [#allocation5], 1024
    $region37: #{forward.1} parent=1 // pred_fallthru
      _
    %v55 = vld [vmem:[%s0] sm:$0xff]
    %v56 = vpack.c.bf16 %v55, %v55
    %v57 = vld [vmem:[%s2] sm:$0xf]
    %v58 = vld [vmem:[%s2 + $0x4] sm:$0xf]
    %v59 = vld [vmem:[%s2 + $0x8] sm:$0xf]
    %v60 = vld [vmem:[%s2 + $0xc] sm:$0xf]
    %v61 = vld [vmem:[%s3] sm:$0x1]
    %v63 = vlaneseq
    %v64 = vshrl.u32 %v63, 7
    %v65 = vsub.s32 0, %v64
    %v66 = vrot.slane %v61, %v65
    %v72 = vunpack.c.l.b16 %v57
    %v73 = vunpack.c.l.b16 %v58
    %v74 = vunpack.c.l.b16 %v59
    %v75 = vunpack.c.l.b16 %v60
    %v76 = vpack.c.b16 %v73, %v72
    %v77 = vpack.c.b16 %v75, %v74
    %vm80 = vcmask 261120
    %v82 = vsel %vm80, %v56, 0
    %84 = vmatprep.subr.bf16.mxu0 0
    %85 = vmatpush1.bf16.msra.mxu0 0
    %86 = vmatprep.subr.bf16.mxu0 0
    %87 = vmatpush1.bf16.msra.mxu0 0
    %88 = vmatprep.subr.bf16.mxu0 0
    %89 = vmatpush1.bf16.msra.mxu0 0
    %90 = vmatprep.subr.bf16.mxu0 0
    %91 = vmatpush1.bf16.msra.mxu0 0
    %92 = vmatprep.subr.bf16.mxu0 0
    %93 = vmatpush1.bf16.msra.mxu0 0
    %94 = vmatprep.subr.bf16.mxu0 0
    %95 = vmatpush1.bf16.msra.mxu0 0
    %96 = vmatprep.subr.bf16.mxu0 0
    %97 = vmatpush1.bf16.msra.mxu0 %v77
    %98 = vmatprep.subr.bf16.mxu0 0
    %99 = vmatpush1.bf16.msra.mxu0 %v76
    %100 = vmatprep.subr.bf16.mxu0 0
    %101 = vmatpush2.bf16.msra.mxu0 0
    %102 = vmatprep.subr.bf16.mxu0 0
    %103 = vmatpush2.bf16.msra.mxu0 0
    %104 = vmatprep.subr.bf16.mxu0 0
    %105 = vmatpush2.bf16.msra.mxu0 0
    %106 = vmatprep.subr.bf16.mxu0 0
    %107 = vmatpush2.bf16.msra.mxu0 0
    %108 = vmatprep.subr.bf16.mxu0 0
    %109 = vmatpush2.bf16.msra.mxu0 0
    %110 = vmatprep.subr.bf16.mxu0 0
    %111 = vmatpush2.bf16.msra.mxu0 0
    %112 = vmatprep.subr.bf16.mxu0 0
    %113 = vmatpush2.bf16.msra.mxu0 0
    %114 = vmatprep.subr.bf16.mxu0 0
    %115 = vmatpush2.bf16.msra.mxu0 0
    %116 = vmatprep.mubr.bf16.mxu0 0
    %117 = vmatmul.mubr.bf16.gmra.mxu0 %v82
    %v118 = vpop.f32.mrf.mxu0
    %v119 = vadd.f32 %v66, %v118
    %v120 = vpop.f32.mrf.mxu0
    %v121 = vpop.f32.mrf.mxu0
    %v122 = vpop.f32.mrf.mxu0
    %123 = vdwg.mxu0
    %v124 = vmax.f32 %v119, 0.0
    %125 = vst [vmem:[%s7] sm:$0xff] %v124
    %v126 = vpack.c.bf16 %v124, %v124
    %v127 = vld [vmem:[#allocation2] sm:$0xff]
    %v128 = vld [vmem:[#allocation2 + $0x8] sm:$0xff]
    %v129 = vld [vmem:[#allocation2 + $0x10] sm:$0xff]
    %v130 = vld [vmem:[#allocation2 + $0x18] sm:$0xff]
    %v131 = vld [vmem:[#allocation2 + $0x20] sm:$0xff]
    %v132 = vld [vmem:[#allocation2 + $0x28] sm:$0xff]
    %v133 = vld [vmem:[#allocation2 + $0x30] sm:$0xff]
    %v134 = vld [vmem:[#allocation2 + $0x38] sm:$0xff]
    %v135 = vld [vmem:[#allocation2 + $0x40] sm:$0xff]
    %v136 = vld [vmem:[#allocation2 + $0x48] sm:$0xff]
    %v137 = vld [vmem:[#allocation2 + $0x50] sm:$0xff]
    %v138 = vld [vmem:[#allocation2 + $0x58] sm:$0xff]
    %v139 = vld [vmem:[#allocation2 + $0x60] sm:$0xff]
    %v140 = vld [vmem:[#allocation2 + $0x68] sm:$0xff]
    %v141 = vld [vmem:[#allocation2 + $0x70] sm:$0xff]
    %v142 = vld [vmem:[#allocation2 + $0x78] sm:$0xff]
    %v143 = vld [vmem:[%s5] sm:$0x3]
    %v145 = vlaneseq
    %v146 = vshrl.u32 %v145, 7
    %v147 = vsub.s32 0, %v146
    %v148 = vrot.slane %v143, %v147
    %v149 = vlaneseq
    %v150 = vshrl.u32 %v149, 7
    %v151 = vsub.s32 1, %v150
    %v152 = vrot.slane %v143, %v151
    %v171 = vunpack.c.l.b16 %v127
    %v172 = vunpack.c.h.b16 %v127
    %v173 = vunpack.c.l.b16 %v128
    %v174 = vunpack.c.h.b16 %v128
    %v175 = vunpack.c.l.b16 %v129
    %v176 = vunpack.c.h.b16 %v129
    %v177 = vunpack.c.l.b16 %v130
    %v178 = vunpack.c.h.b16 %v130
    %v179 = vunpack.c.l.b16 %v131
    %v180 = vunpack.c.h.b16 %v131
    %v181 = vunpack.c.l.b16 %v132
    %v182 = vunpack.c.h.b16 %v132
    %v183 = vunpack.c.l.b16 %v133
    %v184 = vunpack.c.h.b16 %v133
    %v185 = vunpack.c.l.b16 %v134
    %v186 = vunpack.c.h.b16 %v134
    %v187 = vunpack.c.l.b16 %v135
    %v188 = vunpack.c.h.b16 %v135
    %v189 = vunpack.c.l.b16 %v136
    %v190 = vunpack.c.h.b16 %v136
    %v191 = vunpack.c.l.b16 %v137
    %v192 = vunpack.c.h.b16 %v137
    %v193 = vunpack.c.l.b16 %v138
    %v194 = vunpack.c.h.b16 %v138
    %v195 = vunpack.c.l.b16 %v139
    %v196 = vunpack.c.h.b16 %v139
    %v197 = vunpack.c.l.b16 %v140
    %v198 = vunpack.c.h.b16 %v140
    %v199 = vunpack.c.l.b16 %v141
    %v200 = vunpack.c.h.b16 %v141
    %v201 = vunpack.c.l.b16 %v142
    %v202 = vunpack.c.h.b16 %v142
    %v203 = vpack.c.b16 %v173, %v171
    %v204 = vpack.c.b16 %v174, %v172
    %v205 = vpack.c.b16 %v177, %v175
    %v206 = vpack.c.b16 %v178, %v176
    %v207 = vpack.c.b16 %v181, %v179
    %v208 = vpack.c.b16 %v182, %v180
    %v209 = vpack.c.b16 %v185, %v183
    %v210 = vpack.c.b16 %v186, %v184
    %v211 = vpack.c.b16 %v189, %v187
    %v212 = vpack.c.b16 %v190, %v188
    %v213 = vpack.c.b16 %v193, %v191
    %v214 = vpack.c.b16 %v194, %v192
    %v215 = vpack.c.b16 %v197, %v195
    %v216 = vpack.c.b16 %v198, %v196
    %v217 = vpack.c.b16 %v201, %v199
    %v218 = vpack.c.b16 %v202, %v200
    %235 = vmatprep.subr.bf16.mxu0 %v218
    %236 = vmatpush1.bf16.msra.mxu0 %v217
    %237 = vmatprep.subr.bf16.mxu0 %v216
    %238 = vmatpush1.bf16.msra.mxu0 %v215
    %239 = vmatprep.subr.bf16.mxu0 %v214
    %240 = vmatpush1.bf16.msra.mxu0 %v213
    %241 = vmatprep.subr.bf16.mxu0 %v212
    %242 = vmatpush1.bf16.msra.mxu0 %v211
    %243 = vmatprep.subr.bf16.mxu0 %v210
    %244 = vmatpush1.bf16.msra.mxu0 %v209
    %245 = vmatprep.subr.bf16.mxu0 %v208
    %246 = vmatpush1.bf16.msra.mxu0 %v207
    %247 = vmatprep.subr.bf16.mxu0 %v206
    %248 = vmatpush1.bf16.msra.mxu0 %v205
    %249 = vmatprep.subr.bf16.mxu0 %v204
    %250 = vmatpush1.bf16.msra.mxu0 %v203
    %251 = vmatprep.subr.bf16.mxu0 0
    %252 = vmatpush2.bf16.msra.mxu0 0
    %253 = vmatprep.subr.bf16.mxu0 0
    %254 = vmatpush2.bf16.msra.mxu0 0
    %255 = vmatprep.subr.bf16.mxu0 0
    %256 = vmatpush2.bf16.msra.mxu0 0
    %257 = vmatprep.subr.bf16.mxu0 0
    %258 = vmatpush2.bf16.msra.mxu0 0
    %259 = vmatprep.subr.bf16.mxu0 0
    %260 = vmatpush2.bf16.msra.mxu0 0
    %261 = vmatprep.subr.bf16.mxu0 0
    %262 = vmatpush2.bf16.msra.mxu0 0
    %263 = vmatprep.subr.bf16.mxu0 0
    %264 = vmatpush2.bf16.msra.mxu0 0
    %265 = vmatprep.subr.bf16.mxu0 0
    %266 = vmatpush2.bf16.msra.mxu0 0
    %267 = vmatprep.mubr.bf16.mxu0 0
    %268 = vmatmul.mubr.bf16.gmra.mxu0 %v126
    %v269 = vpop.f32.mrf.mxu0
    %v270 = vadd.f32 %v148, %v269
    %v271 = vpop.f32.mrf.mxu0
    %v272 = vadd.f32 %v152, %v271
    %v273 = vpop.f32.mrf.mxu0
    %v274 = vpop.f32.mrf.mxu0
    %275 = vdwg.mxu0
    %v276 = vlaneseq
    %v277 = vand.u32 %v276, 127
    %vm278 = vcmp.lt.s32.totalorder %v277, 48
    %v279 = vmax.f32 %v270, 0.0
    %v280 = vsel %vm278, %v279, %v270
    %v281 = vld [vmem:[%s1] sm:$0xff]
    %v282 = vmul.f32 %v280, %v281
    %v283 = vpack.c.bf16 %v282, %v282
    %v284 = vld [vmem:[#allocation4] sm:$0xf]
    %v285 = vld [vmem:[#allocation4 + $0x4] sm:$0xf]
    %v286 = vld [vmem:[#allocation4 + $0x8] sm:$0xf]
    %v287 = vld [vmem:[#allocation4 + $0xc] sm:$0xf]
    %v288 = vld [vmem:[#allocation4 + $0x10] sm:$0xf]
    %v289 = vld [vmem:[#allocation4 + $0x14] sm:$0xf]
    %v290 = vld [vmem:[#allocation4 + $0x18] sm:$0xf]
    %v291 = vld [vmem:[#allocation4 + $0x1c] sm:$0xf]
    %v292 = vld [vmem:[#allocation4 + $0x20] sm:$0xf]
    %v293 = vld [vmem:[#allocation4 + $0x24] sm:$0xf]
    %v294 = vld [vmem:[#allocation4 + $0x28] sm:$0xf]
    %v295 = vld [vmem:[#allocation4 + $0x2c] sm:$0xf]
    %v296 = vld [vmem:[#allocation4 + $0x30] sm:$0xf]
    %v297 = vld [vmem:[#allocation4 + $0x34] sm:$0xf]
    %v298 = vld [vmem:[#allocation4 + $0x38] sm:$0xf]
    %v299 = vld [vmem:[#allocation4 + $0x3c] sm:$0xf]
    %v316 = vunpack.c.l.b16 %v284
    %v317 = vunpack.c.l.b16 %v285
    %v318 = vunpack.c.l.b16 %v286
    %v319 = vunpack.c.l.b16 %v287
    %v320 = vunpack.c.l.b16 %v288
    %v321 = vunpack.c.l.b16 %v289
    %v322 = vunpack.c.l.b16 %v290
    %v323 = vunpack.c.l.b16 %v291
    %v324 = vunpack.c.l.b16 %v292
    %v325 = vunpack.c.l.b16 %v293
    %v326 = vunpack.c.l.b16 %v294
    %v327 = vunpack.c.l.b16 %v295
    %v328 = vunpack.c.l.b16 %v296
    %v329 = vunpack.c.l.b16 %v297
    %v330 = vunpack.c.l.b16 %v298
    %v331 = vunpack.c.l.b16 %v299
    %v332 = vpack.c.b16 %v317, %v316
    %v333 = vpack.c.b16 %v319, %v318
    %v334 = vpack.c.b16 %v321, %v320
    %v335 = vpack.c.b16 %v323, %v322
    %v336 = vpack.c.b16 %v325, %v324
    %v337 = vpack.c.b16 %v327, %v326
    %v338 = vpack.c.b16 %v329, %v328
    %v339 = vpack.c.b16 %v331, %v330
    %348 = vmatprep.subr.bf16.mxu0 0
    %349 = vmatpush1.bf16.msra.mxu0 %v339
    %350 = vmatprep.subr.bf16.mxu0 0
    %351 = vmatpush1.bf16.msra.mxu0 %v338
    %352 = vmatprep.subr.bf16.mxu0 0
    %353 = vmatpush1.bf16.msra.mxu0 %v337
    %354 = vmatprep.subr.bf16.mxu0 0
    %355 = vmatpush1.bf16.msra.mxu0 %v336
    %356 = vmatprep.subr.bf16.mxu0 0
    %357 = vmatpush1.bf16.msra.mxu0 %v335
    %358 = vmatprep.subr.bf16.mxu0 0
    %359 = vmatpush1.bf16.msra.mxu0 %v334
    %360 = vmatprep.subr.bf16.mxu0 0
    %361 = vmatpush1.bf16.msra.mxu0 %v333
    %362 = vmatprep.subr.bf16.mxu0 0
    %363 = vmatpush1.bf16.msra.mxu0 %v332
    %364 = vmatprep.subr.bf16.mxu0 0
    %365 = vmatpush2.bf16.msra.mxu0 0
    %366 = vmatprep.subr.bf16.mxu0 0
    %367 = vmatpush2.bf16.msra.mxu0 0
    %368 = vmatprep.subr.bf16.mxu0 0
    %369 = vmatpush2.bf16.msra.mxu0 0
    %370 = vmatprep.subr.bf16.mxu0 0
    %371 = vmatpush2.bf16.msra.mxu0 0
    %372 = vmatprep.subr.bf16.mxu0 0
    %373 = vmatpush2.bf16.msra.mxu0 0
    %374 = vmatprep.subr.bf16.mxu0 0
    %375 = vmatpush2.bf16.msra.mxu0 0
    %376 = vmatprep.subr.bf16.mxu0 0
    %377 = vmatpush2.bf16.msra.mxu0 0
    %378 = vmatprep.subr.bf16.mxu0 0
    %379 = vmatpush2.bf16.msra.mxu0 0
    %380 = vmatprep.mubr.bf16.mxu0 0
    %381 = vmatmul.mubr.bf16.gmra.mxu0 %v283
    %v382 = vpop.f32.mrf.mxu0
    %v383 = vadd.f32 %v272, %v382
    %v384 = vpop.f32.mrf.mxu0
    %v385 = vpop.f32.mrf.mxu0
    %v386 = vpop.f32.mrf.mxu0
    %387 = vdwg.mxu0
    %388 = vst [vmem:[%s7 + $0x8] sm:$0xff] %v383
    // Predicated region
    $region38: #{forward.1} parent=1 // pred_check
      _
    $region39: #{forward.1} parent=1 // pred_check_branch
      %390 = sbr.rel (0) target = $region41
    $region40: #{forward.1} parent=1 // pred_region
      _
    $region41: #{forward.1} parent=1 // pred_fallthru
      _
    // Predicated region
    $region42: #{forward.1} parent=1 // pred_check
      _
    $region43: #{forward.1} parent=1 // pred_check_branch
      %392 = sbr.rel (0) target = $region45
    $region44: #{forward.1} parent=1 // pred_region
      _
    $region45: #{forward.1} parent=1 // pred_fallthru
      _
    %393 = vsyncpa [#allocation3], 1
    %394 = vsyncpa [#allocation5], 1

</llo_original>
